<compile_context>
chip_gen: v7x
topology: tpu7x:2x2x1
jax: 0.10.0
libtpu: 0.0.40
codegen_flags: <defaults>
</compile_context>

<pallas_src>
import functools

import jax
import jax.numpy as jnp
import numpy as np
from jax.experimental import pallas as pl
from jax.experimental.pallas import tpu as pltpu


def conv1d_relu_kernel(x_ref, w_ref, o_ref):
    # x_ref: (B, C_in, L)      whole batch, NCL layout (L on lanes), input dtype (f32)
    # w_ref: (C_out, 3*C_in)   fused tap-major weights, already in the compute dtype
    # o_ref: (B, C_out, L)
    B, C_in, L = x_ref.shape
    compute_dtype = w_ref.dtype

    # padding=1 boundary masks, built ONCE for the whole batch.
    col = jax.lax.broadcasted_iota(jnp.int32, (C_in, L), 1)
    left_edge = col == 0            # column that wraps around in roll(+1)
    right_edge = col == L - 1       # column that wraps around in roll(-1)
    zeros2d = jnp.zeros((C_in, L), dtype=x_ref.dtype)

    w_cat = w_ref[...]              # (C_out, 3*C_in), resident, no per-step cast

    # Tiny unrolled batch loop inside the single grid step (B is static and small).
    for b in range(B):
        x = x_ref[b]                                                        # (C_in, L)

        # padding=1 along L, in-register: XLU roll + mask the wrapped column.
        x_m1 = jnp.where(left_edge, zeros2d, pltpu.roll(x, 1, axis=1))       # x[:, l-1]
        x_p1 = jnp.where(right_edge, zeros2d, pltpu.roll(x, L - 1, axis=1))  # x[:, l+1]

        # Fuse the three taps: stack them on the sublane (channel) axis, cast ONCE.
        x_cat = jnp.concatenate([x_m1, x, x_p1], axis=0).astype(compute_dtype)  # (3*C_in, L)

        # One MXU pass: (C_out, 3*C_in) @ (3*C_in, L), f32 accumulate, fused ReLU on store.
        acc = jnp.dot(w_cat, x_cat, preferred_element_type=jnp.float32)      # (C_out, L)
        o_ref[b] = jnp.maximum(acc, 0.0).astype(o_ref.dtype)


@functools.partial(jax.jit, static_argnames=("compute_dtype",))
def conv_block_forward(x_ncl, weight, *, compute_dtype=jnp.bfloat16):
    """x_ncl: (B, C_in, L). weight: (C_out, C_in, 3) (PyTorch Conv1d OIK layout)."""
    B, C_in, L = x_ncl.shape
    C_out, C_in_w, K = weight.shape
    assert C_in_w == C_in and K == 3, "weight must be (C_out, C_in, 3) with C_in matching x"

    # (C_out, C_in, 3) -> (C_out, 3, C_in) -> (C_out, 3*C_in): tap-major rows so that
    # W_cat @ concat([x_{l-1}, x_l, x_{l+1}], channel axis) reproduces the conv.
    # Cast here, once, so the kernel never re-casts the weights.
    w_cat = (jnp.transpose(weight, (0, 2, 1))
             .reshape(C_out, 3 * C_in)
             .astype(compute_dtype))

    # Single invocation, no grid: whole arrays live in VMEM for the one step,
    # one input DMA + one output DMA total.
    out = pl.pallas_call(
        conv1d_relu_kernel,
        out_shape=jax.ShapeDtypeStruct((B, C_out, L), x_ncl.dtype),
    )(x_ncl, w_cat)

    return out                                   # already (B, C_out, L)


def reference_forward(x_ncl, weight):
    # Pure-JAX reference: conv1d (NCL, OIK layout) + ReLU, matches F.relu(F.conv1d(...)).
    y = jax.lax.conv_general_dilated(
        x_ncl, weight, window_strides=(1,), padding=((1, 1),),
        dimension_numbers=("NCH", "OIH", "NCH"),
        precision=jax.lax.Precision.HIGHEST)
    return jnp.maximum(y, 0.0)


if __name__ == "__main__":
    B, num_ch, L = 2, 4, 16
    key = jax.random.PRNGKey(0)
    kx, kw = jax.random.split(key)

    x = jax.random.normal(kx, (B, num_ch, L), dtype=jnp.float32)

    # Deterministic Conv1d weight init (kaiming-uniform style, like PyTorch default).
    fan_in = num_ch * 3
    bound = 1.0 / np.sqrt(fan_in)
    weight = jax.random.uniform(kw, (num_ch, num_ch, 3), dtype=jnp.float32,
                                minval=-bound, maxval=bound)

    out = jax.block_until_ready(conv_block_forward(x, weight))

    # Primary correctness check: same math with inputs rounded to bf16 (what the MXU
    # consumes), f32 accumulation -> only accumulation-order noise remains.
    x_q = x.astype(jnp.bfloat16).astype(jnp.float32)
    w_q = weight.astype(jnp.bfloat16).astype(jnp.float32)
    ref_q = jax.block_until_ready(reference_forward(x_q, w_q))
    np.testing.assert_allclose(np.asarray(out), np.asarray(ref_q), rtol=1e-4, atol=1e-4)

    # Sanity check against the pure-f32 reference; tolerance reflects the intentional
    # bf16 MXU inputs (use compute_dtype=jnp.float32 for bit-closer parity).
    ref = jax.block_until_ready(reference_forward(x, weight))
    np.testing.assert_allclose(np.asarray(out), np.asarray(ref), rtol=7e-2, atol=7e-2)

    print("KERNEL_OK")
</pallas_src>

<mosaic_0001>
module attributes {stable_mosaic.version = 11 : i64} {
  func.func @conv1d_relu_kernel(%arg0: memref<2x4x16xf32, #tpu.memory_space<vmem>>, %arg1: memref<4x12xbf16, #tpu.memory_space<vmem>>, %arg2: memref<2x4x16xf32, #tpu.memory_space<vmem>>) attributes {dimension_semantics = [], scalar_prefetch = 0 : i64, scratch_operands = 0 : i64, tpu.core_type = #tpu.core_type<tc>} {
    %0 = tpu.iota {dimensions = array<i32: 1>} : vector<4x16xi32>
    %c0_i32 = arith.constant 0 : i32
    %1 = vector.broadcast %c0_i32 : i32 to vector<4x16xi32>
    %2 = arith.cmpi eq, %0, %1 : vector<4x16xi32>
    %c15_i32 = arith.constant 15 : i32
    %3 = vector.broadcast %c15_i32 : i32 to vector<4x16xi32>
    %4 = arith.cmpi eq, %0, %3 : vector<4x16xi32>
    %cst = arith.constant 0.000000e+00 : f32
    %5 = vector.broadcast %cst : f32 to vector<4x16xf32>
    %c0 = arith.constant 0 : index
    %c0_0 = arith.constant 0 : index
    %6 = vector.load %arg1[%c0, %c0_0] : memref<4x12xbf16, #tpu.memory_space<vmem>>, vector<4x12xbf16>
    %c0_1 = arith.constant 0 : index
    %c0_2 = arith.constant 0 : index
    %c0_3 = arith.constant 0 : index
    %7 = vector.load %arg0[%c0_1, %c0_2, %c0_3] : memref<2x4x16xf32, #tpu.memory_space<vmem>>, vector<1x4x16xf32>
    %8 = vector.shape_cast %7 : vector<1x4x16xf32> to vector<4x16xf32>
    %c1_i32 = arith.constant 1 : i32
    %9 = tpu.dynamic_rotate %8 by %c1_i32 dim 1 : vector<4x16xf32>, i32 -> vector<4x16xf32>
    %10 = arith.select %2, %5, %9 : vector<4x16xi1>, vector<4x16xf32>
    %c15_i32_4 = arith.constant 15 : i32
    %11 = tpu.dynamic_rotate %8 by %c15_i32_4 dim 1 : vector<4x16xf32>, i32 -> vector<4x16xf32>
    %12 = arith.select %4, %5, %11 : vector<4x16xi1>, vector<4x16xf32>
    %13 = tpu.concatenate %10, %8, %12 in 0 : vector<4x16xf32>, vector<4x16xf32>, vector<4x16xf32> -> vector<12x16xf32>
    %14 = arith.truncf %13 : vector<12x16xf32> to vector<12x16xbf16>
    %cst_5 = arith.constant dense<0.000000e+00> : vector<4x16xf32>
    %15 = tpu.matmul %6, %14, %cst_5 {dimension_numbers = #tpu.dot_dimension_numbers<[1], [0], [0], [1], [0, 0, 1, 1], [], []>} : vector<4x12xbf16>, vector<12x16xbf16>, vector<4x16xf32> -> vector<4x16xf32>
    %cst_6 = arith.constant 0.000000e+00 : f32
    %16 = vector.broadcast %cst_6 : f32 to vector<4x16xf32>
    %17 = arith.maximumf %15, %16 : vector<4x16xf32>
    %c0_7 = arith.constant 0 : index
    %c0_8 = arith.constant 0 : index
    %c0_9 = arith.constant 0 : index
    %18 = vector.load %arg2[%c0_7, %c0_8, %c0_9] : memref<2x4x16xf32, #tpu.memory_space<vmem>>, vector<1x4x16xf32>
    %19 = vector.shape_cast %18 : vector<1x4x16xf32> to vector<4x16xf32>
    %20 = vector.shape_cast %17 : vector<4x16xf32> to vector<1x4x16xf32>
    tpu.vector_store %arg2[%c0_7, %c0_8, %c0_9], %20 {strides = array<i32>} : memref<2x4x16xf32, #tpu.memory_space<vmem>>, vector<1x4x16xf32>,
    %c1 = arith.constant 1 : index
    %c0_10 = arith.constant 0 : index
    %c0_11 = arith.constant 0 : index
    %21 = vector.load %arg0[%c1, %c0_10, %c0_11] : memref<2x4x16xf32, #tpu.memory_space<vmem>>, vector<1x4x16xf32>
    %22 = vector.shape_cast %21 : vector<1x4x16xf32> to vector<4x16xf32>
    %c1_i32_12 = arith.constant 1 : i32
    %23 = tpu.dynamic_rotate %22 by %c1_i32_12 dim 1 : vector<4x16xf32>, i32 -> vector<4x16xf32>
    %24 = arith.select %2, %5, %23 : vector<4x16xi1>, vector<4x16xf32>
    %c15_i32_13 = arith.constant 15 : i32
    %25 = tpu.dynamic_rotate %22 by %c15_i32_13 dim 1 : vector<4x16xf32>, i32 -> vector<4x16xf32>
    %26 = arith.select %4, %5, %25 : vector<4x16xi1>, vector<4x16xf32>
    %27 = tpu.concatenate %24, %22, %26 in 0 : vector<4x16xf32>, vector<4x16xf32>, vector<4x16xf32> -> vector<12x16xf32>
    %28 = arith.truncf %27 : vector<12x16xf32> to vector<12x16xbf16>
    %cst_14 = arith.constant dense<0.000000e+00> : vector<4x16xf32>
    %29 = tpu.matmul %6, %28, %cst_14 {dimension_numbers = #tpu.dot_dimension_numbers<[1], [0], [0], [1], [0, 0, 1, 1], [], []>} : vector<4x12xbf16>, vector<12x16xbf16>, vector<4x16xf32> -> vector<4x16xf32>
    %cst_15 = arith.constant 0.000000e+00 : f32
    %30 = vector.broadcast %cst_15 : f32 to vector<4x16xf32>
    %31 = arith.maximumf %29, %30 : vector<4x16xf32>
    %c1_16 = arith.constant 1 : index
    %c0_17 = arith.constant 0 : index
    %c0_18 = arith.constant 0 : index
    %32 = vector.load %arg2[%c1_16, %c0_17, %c0_18] : memref<2x4x16xf32, #tpu.memory_space<vmem>>, vector<1x4x16xf32>
    %33 = vector.shape_cast %32 : vector<1x4x16xf32> to vector<4x16xf32>
    %34 = vector.shape_cast %31 : vector<4x16xf32> to vector<1x4x16xf32>
    tpu.vector_store %arg2[%c1_16, %c0_17, %c0_18], %34 {strides = array<i32>} : memref<2x4x16xf32, #tpu.memory_space<vmem>>, vector<1x4x16xf32>,
    return
  }
}

</mosaic_0001>

<llo_original>
// kernel: conv_block_forward.1
$region0: #{conv_block_forward.1}
  #allocation0 [shape = 'u32[]', space=smem, size = 0x4, offset = 0x4, fixed_abs, tag = 'smem constant byte address 0x4 - core index']
  #allocation1 [shape = 'u32[144,128]{1,0:T(1,128)}', space=vmem, size = 0x12000, scoped, tag = 'internal scratch']
  %s0 = inlined_call_operand.vmem [shape: f32[2,4,16], index: 0, kind: input, shape index: {}]
  %s1 = inlined_call_operand.vmem [shape: bf16[4,12], index: 1, kind: input, shape index: {}]
  %s2 = inlined_call_operand.hbm [shape: f32[2,4,16], index: 2, kind: output, shape index: {}]
  %s3 = sld [smem:[#allocation0]]
  $region18: #{conv_block_forward.1} parent=0
    _
  %s5 = ssub.s32 1, %s3
  %s6 = scalar_select 0, %s5, %s3
  $region1: #{conv_block_forward.1} parent=0
    #allocation2 [shape = 'u8[4096]{0}', space=vmem, size = 0x1000, scoped, tag = 'output window, operand 0, single buffered']
    #allocation3 [shape = 's32[1]{0}', space=sflag, size = 0x4, scoped, tag = 'scoped memory for conv_block_forward.1']
    %7 = vsyncpa [#allocation3], 0
    // Predicated region
    $region2: #{conv_block_forward.1} parent=1 // pred_check
      _
    $region3: #{conv_block_forward.1} parent=1 // pred_check_branch
      %9 = sbr.rel (0) target = $region5
    $region4: #{conv_block_forward.1} parent=1 // pred_region
      _
    $region5: #{conv_block_forward.1} parent=1 // pred_fallthru
      _
    // Predicated region
    $region6: #{conv_block_forward.1} parent=1 // pred_check
      _
    $region7: #{conv_block_forward.1} parent=1 // pred_check_branch
      %11 = sbr.rel (0) target = $region9
    $region8: #{conv_block_forward.1} parent=1 // pred_region
      _
    $region9: #{conv_block_forward.1} parent=1 // pred_fallthru
      _
    %v13 = vlaneseq
    %v14 = vand.u32 %v13, 127
    %vm15 = vcmp.eq.s32.totalorder %v14, 0
    %vm16 = vcmp.eq.s32.totalorder %v14, 15
    %v17 = vld [vmem:[%s1] sm:$0x3]
    %v18 = vld [vmem:[%s0] sm:$0xf]
    %vm19 = vcmask 1047680
    %20 = vrot.lane.b32.xlu0 %v18, 16
    %v21 = vpop.permute.xlu0 %20
    %v22 = vsel %vm19, %v21, %v18
    %23 = vrot.lane.b32.xlu0 %v22, 16
    %v24 = vpop.permute.xlu0 %23
    %v25 = vsel %vm19, %v24, %v18
    %27 = vrot.lane.b32.xlu0 %v25, 113
    %v28 = vpop.permute.xlu0 %27
    %v30 = vsel %vm15, 0.0, %v28
    %31 = vrot.lane.b32.xlu0 %v25, 127
    %v32 = vpop.permute.xlu0 %31
    %v34 = vsel %vm16, 0.0, %v32
    %v36 = vrot.slane %v18, 4
    %vm38 = vcmask 1043456
    %v39 = vsel %vm38, %v30, %v36
    %v40 = vpack.c.bf16 %v34, %v39
    %vm41 = vcmask 97280
    %v43 = vsel %vm41, %v17, 0
    %vm45 = vcmask 1045504
    %v47 = vsel %vm45, %v40, 0
    %49 = vmatprep.subr.bf16.mxu0 0
    %50 = vmatpush1.bf16.msra.mxu0 %v47
    %51 = vmatprep.subr.bf16.mxu0 0
    %52 = vmatpush1.bf16.msra.mxu0 0
    %53 = vmatprep.subr.bf16.mxu0 0
    %54 = vmatpush1.bf16.msra.mxu0 0
    %55 = vmatprep.subr.bf16.mxu0 0
    %56 = vmatpush1.bf16.msra.mxu0 0
    %57 = vmatprep.subr.bf16.mxu0 0
    %58 = vmatpush1.bf16.msra.mxu0 0
    %59 = vmatprep.subr.bf16.mxu0 0
    %60 = vmatpush1.bf16.msra.mxu0 0
    %61 = vmatprep.subr.bf16.mxu0 0
    %62 = vmatpush1.bf16.msra.mxu0 0
    %63 = vmatprep.subr.bf16.mxu0 0
    %64 = vmatpush1.bf16.msra.mxu0 0
    %65 = vmatprep.subr.bf16.mxu0 0
    %66 = vmatpush1.bf16.msra.mxu0 0
    %67 = vmatprep.subr.bf16.mxu0 0
    %68 = vmatpush1.bf16.msra.mxu0 0
    %69 = vmatprep.subr.bf16.mxu0 0
    %70 = vmatpush1.bf16.msra.mxu0 0
    %71 = vmatprep.subr.bf16.mxu0 0
    %72 = vmatpush1.bf16.msra.mxu0 0
    %73 = vmatprep.subr.bf16.mxu0 0
    %74 = vmatpush1.bf16.msra.mxu0 0
    %75 = vmatprep.subr.bf16.mxu0 0
    %76 = vmatpush1.bf16.msra.mxu0 0
    %77 = vmatprep.subr.bf16.mxu0 0
    %78 = vmatpush1.bf16.msra.mxu0 0
    %79 = vmatprep.subr.bf16.mxu0 0
    %80 = vmatpush1.bf16.msra.mxu0 0
    %81 = vmatprep.mubr.bf16.mxu0 0
    %82 = vmatmul.mubr.bf16.gmra.mrb[0].mxu0 %v43
    %v83 = vpop.f32.mrb[0].mxu0
    %v84 = vadd.f32 0.0, %v83
    %v85 = vpop.f32.mrb[0].mxu0
    %v86 = vpop.f32.mrb[0].mxu0
    %v87 = vpop.f32.mrb[0].mxu0
    %88 = vdwg.mxu0
    %v89 = vmax.f32 %v84, 0.0
    %vm90 = vcmask 125952
    %91 = vst.msk [vmem:[#allocation2] sm:$0xf] %vm90, %v89
    %s92 = scalar_lea.vmem %s0, 4
    %v93 = vld [vmem:[%s92] sm:$0xf]
    %94 = vrot.lane.b32.xlu0 %v93, 16
    %v95 = vpop.permute.xlu0 %94
    %v96 = vsel %vm19, %v95, %v93
    %97 = vrot.lane.b32.xlu0 %v96, 16
    %v98 = vpop.permute.xlu0 %97
    %v99 = vsel %vm19, %v98, %v93
    %101 = vrot.lane.b32.xlu0 %v99, 113
    %v102 = vpop.permute.xlu0 %101
    %v104 = vsel %vm15, 0.0, %v102
    %105 = vrot.lane.b32.xlu0 %v99, 127
    %v106 = vpop.permute.xlu0 %105
    %v108 = vsel %vm16, 0.0, %v106
    %v110 = vrot.slane %v93, 4
    %v112 = vsel %vm38, %v104, %v110
    %v113 = vpack.c.bf16 %v108, %v112
    %v115 = vsel %vm45, %v113, 0
    %117 = vmatprep.subr.bf16.mxu0 0
    %118 = vmatpush1.bf16.msra.mxu0 %v115
    %119 = vmatprep.subr.bf16.mxu0 0
    %120 = vmatpush1.bf16.msra.mxu0 0
    %121 = vmatprep.subr.bf16.mxu0 0
    %122 = vmatpush1.bf16.msra.mxu0 0
    %123 = vmatprep.subr.bf16.mxu0 0
    %124 = vmatpush1.bf16.msra.mxu0 0
    %125 = vmatprep.subr.bf16.mxu0 0
    %126 = vmatpush1.bf16.msra.mxu0 0
    %127 = vmatprep.subr.bf16.mxu0 0
    %128 = vmatpush1.bf16.msra.mxu0 0
    %129 = vmatprep.subr.bf16.mxu0 0
    %130 = vmatpush1.bf16.msra.mxu0 0
    %131 = vmatprep.subr.bf16.mxu0 0
    %132 = vmatpush1.bf16.msra.mxu0 0
    %133 = vmatprep.subr.bf16.mxu0 0
    %134 = vmatpush1.bf16.msra.mxu0 0
    %135 = vmatprep.subr.bf16.mxu0 0
    %136 = vmatpush1.bf16.msra.mxu0 0
    %137 = vmatprep.subr.bf16.mxu0 0
    %138 = vmatpush1.bf16.msra.mxu0 0
    %139 = vmatprep.subr.bf16.mxu0 0
    %140 = vmatpush1.bf16.msra.mxu0 0
    %141 = vmatprep.subr.bf16.mxu0 0
    %142 = vmatpush1.bf16.msra.mxu0 0
    %143 = vmatprep.subr.bf16.mxu0 0
    %144 = vmatpush1.bf16.msra.mxu0 0
    %145 = vmatprep.subr.bf16.mxu0 0
    %146 = vmatpush1.bf16.msra.mxu0 0
    %147 = vmatprep.subr.bf16.mxu0 0
    %148 = vmatpush1.bf16.msra.mxu0 0
    %149 = vmatprep.mubr.bf16.mxu0 0
    %150 = vmatmul.mubr.bf16.gmra.mrb[0].mxu0 %v43
    %v151 = vpop.f32.mrb[0].mxu0
    %v152 = vadd.f32 0.0, %v151
    %v153 = vpop.f32.mrb[0].mxu0
    %v154 = vpop.f32.mrb[0].mxu0
    %v155 = vpop.f32.mrb[0].mxu0
    %156 = vdwg.mxu0
    %v157 = vmax.f32 %v152, 0.0
    %s158 = scalar_lea.vmem [#allocation2], 4
    %159 = vst.msk [vmem:[%s158] sm:$0xf] %vm90, %v157
    // Predicated region
    $region10: #{conv_block_forward.1} parent=1 // pred_check
      _
    $region11: #{conv_block_forward.1} parent=1 // pred_check_branch
      %161 = sbr.rel (0) target = $region13
    $region12: #{conv_block_forward.1} parent=1 // pred_region
      %s163 = ssub.s32 128, 128
      %164 = vsyncadd [#allocation3], %s163
      %s165 = sshll.u32 [#allocation2], 4
      %s166 = int_to_ptr.vmem [resolvable:$true] %s165
      %171 = dma.vmem_to_hbm [thread:$0]  %s166, 128, %s2, [#allocation3], 64, 64, 4
    $region13: #{conv_block_forward.1} parent=1 // pred_fallthru
      _
    // Predicated region
    $region14: #{conv_block_forward.1} parent=1 // pred_check
      _
    $region15: #{conv_block_forward.1} parent=1 // pred_check_branch
      %173 = sbr.rel (0) target = $region17
    $region16: #{conv_block_forward.1} parent=1 // pred_region
      %174 = dma.done [#allocation3], 128
    $region17: #{conv_block_forward.1} parent=1 // pred_fallthru
      _
    %175 = vsyncpa [#allocation3], 1

</llo_original>
